<compile_context>
chip_gen: v7x
topology: tpu7x:2x2x1
jax: 0.10.0
libtpu: 0.0.40
codegen_flags: <defaults>
</compile_context>

<pallas_src>
import functools

import jax
import jax.numpy as jnp
from jax.experimental import pallas as pl
from jax.experimental.pallas import tpu as pltpu


def _round_up(x, m):
    return ((x + m - 1) // m) * m


def _mlp_kernel(x_ref, w1t_ref, b1_ref, w2t_ref, b2_ref, w3t_ref, b3_ref, o_ref,
                *, compute_dtype):
    # x_ref : (tb, D_in) f32, row-major straight from HBM (no host prep).
    # w*t   : (out_features, in_features) in compute_dtype (tiny, DMA'd once).
    # b*    : (out_features, 1) f32 bias columns.
    # o_ref : (tb, D_out) row-major output tile.

    # Feature-major activations: lane axis = batch tile (lane-dense VPU work,
    # MXU N = tb).  The 32-wide transpose goes to the XLU, which has slack.
    xT = jnp.transpose(x_ref[...]).astype(compute_dtype)               # (D_in, tb)

    # layer 0: Simple_Layer, activation = relu
    h = jnp.dot(w1t_ref[...], xT, preferred_element_type=jnp.float32)  # (H1, tb) f32
    h = jnp.maximum(h + b1_ref[...], 0.0)

    # layer 1: Simple_Layer, activation = relu
    h = jnp.dot(w2t_ref[...], h.astype(compute_dtype),
                preferred_element_type=jnp.float32)                    # (H2, tb) f32
    h = jnp.maximum(h + b2_ref[...], 0.0)

    # layer 2: Simple_Layer, activation = linear (last layer of Net)
    oT = jnp.dot(w3t_ref[...], h.astype(compute_dtype),
                 preferred_element_type=jnp.float32) + b3_ref[...]     # (D_out, tb)

    # Tiny (D_out, tb) -> (tb, D_out) transpose so the HBM block is written
    # row-major (contiguous) with no host-side post pass.
    o_ref[...] = jnp.transpose(oT).astype(o_ref.dtype)


def net_forward(x, params, *, batch_tile=None, compute_dtype=jnp.bfloat16,
                out_dtype=jnp.float32, vmem_limit_bytes=None):
    """Run Net.forward (3 Simple_Layers: relu, relu, linear) in one Pallas kernel.

    x      : (B, input_size) float32, row-major.
    params : dict with W1,b1,W2,b2,W3,b3 (weights (in, out), biases (1, out)).
    Returns (B, output_size) in `out_dtype` (default float32).
    """
    B, D_in = x.shape
    W1, b1 = params["W1"], params["b1"]
    W2, b2 = params["W2"], params["b2"]
    W3, b3 = params["W3"], params["b3"]
    D_out = W3.shape[1]

    # Batch tile: multiple of 128 (lane width of the feature-major layout).
    # Default guarantees >=2 grid steps when B allows (v7x megacore) and caps
    # the tile at 8192 rows so VMEM stays under every generation's default.
    if batch_tile is None:
        half = _round_up(max(-(-B // 2), 1), 128)
        tb = min(8192, half)
    else:
        tb = batch_tile
    assert tb % 128 == 0, "batch_tile must be a multiple of 128"
    grid = (pl.cdiv(B, tb),)

    # Weight/bias prep is on (32-ish)-sized parameter tensors only: negligible.
    W1t = jnp.transpose(W1).astype(compute_dtype)        # (H1, D_in)
    W2t = jnp.transpose(W2).astype(compute_dtype)        # (H2, H1)
    W3t = jnp.transpose(W3).astype(compute_dtype)        # (D_out, H2)
    b1c = jnp.reshape(b1, (-1, 1)).astype(jnp.float32)   # (H1, 1)
    b2c = jnp.reshape(b2, (-1, 1)).astype(jnp.float32)   # (H2, 1)
    b3c = jnp.reshape(b3, (-1, 1)).astype(jnp.float32)   # (D_out, 1)

    def _const_spec(arr):
        n = arr.ndim
        return pl.BlockSpec(arr.shape, lambda i, _n=n: (0,) * _n)

    compiler_kwargs = dict(dimension_semantics=("parallel",))
    if vmem_limit_bytes is not None:
        compiler_kwargs["vmem_limit_bytes"] = vmem_limit_bytes

    out = pl.pallas_call(
        functools.partial(_mlp_kernel, compute_dtype=compute_dtype),
        out_shape=jax.ShapeDtypeStruct((B, D_out), out_dtype),
        grid_spec=pltpu.PrefetchScalarGridSpec(
            num_scalar_prefetch=0,
            grid=grid,
            in_specs=[
                pl.BlockSpec((tb, D_in), lambda i: (i, 0)),   # x, tiled over batch
                _const_spec(W1t), _const_spec(b1c),
                _const_spec(W2t), _const_spec(b2c),
                _const_spec(W3t), _const_spec(b3c),
            ],
            out_specs=pl.BlockSpec((tb, D_out), lambda i: (i, 0)),
        ),
        compiler_params=pltpu.CompilerParams(**compiler_kwargs),
    )(x, W1t, b1c, W2t, b2c, W3t, b3c)
    return out


def init_net_params(key, input_size, struct_param):
    """Deterministic init for Net's Simple_Layers.

    struct_param: list of (num_neurons, 'Simple_Layer', {'activation': ...})
    """
    params = {}
    prev = input_size
    for k, (num_neurons, layer_type, _settings) in enumerate(struct_param):
        assert layer_type == "Simple_Layer"
        key, kw, kb = jax.random.split(key, 3)
        scale = 1.0 / jnp.sqrt(jnp.float32(prev))
        W = jax.random.uniform(kw, (prev, num_neurons), jnp.float32, -scale, scale)
        b = jax.random.uniform(kb, (1, num_neurons), jnp.float32, -scale, scale)
        params[f"W{k+1}"] = W
        params[f"b{k+1}"] = b
        prev = num_neurons
    return params


def net_forward_ref(x, params):
    """Plain-JAX f32 reference matching Net.forward semantics."""
    h = jnp.maximum(x @ params["W1"] + params["b1"], 0.0)
    h = jnp.maximum(h @ params["W2"] + params["b2"], 0.0)
    return h @ params["W3"] + params["b3"]


if __name__ == "__main__":
    # Net(input_size=32, struct_param=[[32,'Simple_Layer',{'activation':'relu'}],
    #                                  [32,'Simple_Layer',{'activation':'relu'}],
    #                                  [16,'Simple_Layer',{'activation':'linear'}]])
    input_size = 32
    struct_param = [
        (32, "Simple_Layer", {"activation": "relu"}),
        (32, "Simple_Layer", {"activation": "relu"}),
        (16, "Simple_Layer", {"activation": "linear"}),
    ]

    key = jax.random.PRNGKey(0)
    params = init_net_params(key, input_size, struct_param)

    # Small-shape check (batch=8): single grid step with a partial edge block
    # (no host-side padding is materialized; OOB rows are never written back).
    key, kx = jax.random.split(key)
    x_small = jax.random.normal(kx, (8, input_size), jnp.float32)
    out_small = jax.block_until_ready(net_forward(x_small, params))
    ref_small = net_forward_ref(x_small, params)
    assert out_small.shape == (8, 16)
    assert jnp.allclose(out_small, ref_small, atol=3e-2, rtol=3e-2)

    # Multi-tile check (batch=512, tile=128 -> grid of 4 pipelined steps).
    key, kx2 = jax.random.split(key)
    x_big = jax.random.normal(kx2, (512, input_size), jnp.float32)
    out_big = jax.block_until_ready(net_forward(x_big, params, batch_tile=128))
    ref_big = net_forward_ref(x_big, params)
    assert out_big.shape == (512, 16)
    assert jnp.allclose(out_big, ref_big, atol=3e-2, rtol=3e-2)

    # Ragged batch with default tile selection (B=300 -> tb=256, grid of 2,
    # last block partial): exercises the no-padding edge-block path.
    key, kx3 = jax.random.split(key)
    x_rag = jax.random.normal(kx3, (300, input_size), jnp.float32)
    out_rag = jax.block_until_ready(net_forward(x_rag, params))
    ref_rag = net_forward_ref(x_rag, params)
    assert out_rag.shape == (300, 16)
    assert jnp.allclose(out_rag, ref_rag, atol=3e-2, rtol=3e-2)

    print("KERNEL_OK")
</pallas_src>

<mosaic_0001>
module attributes {stable_mosaic.version = 11 : i64} {
  func.func @_mlp_kernel(%arg0: i32, %arg1: memref<128x32xf32, #tpu.memory_space<vmem>>, %arg2: memref<32x32xbf16, #tpu.memory_space<vmem>>, %arg3: memref<32x1xf32, #tpu.memory_space<vmem>>, %arg4: memref<32x32xbf16, #tpu.memory_space<vmem>>, %arg5: memref<32x1xf32, #tpu.memory_space<vmem>>, %arg6: memref<16x32xbf16, #tpu.memory_space<vmem>>, %arg7: memref<16x1xf32, #tpu.memory_space<vmem>>, %arg8: memref<128x16xf32, #tpu.memory_space<vmem>>) attributes {dimension_semantics = [#tpu.dimension_semantics<parallel>], iteration_bounds = array<i64: 1>, scalar_prefetch = 0 : i64, scratch_operands = 0 : i64, tpu.core_type = #tpu.core_type<tc>, window_params = [{transform_indices = @transform_0, window_bounds = array<i64: 128, 32>}, {pipeline_mode = #tpu.pipeline_mode<synchronous>, transform_indices = @transform_1, window_bounds = array<i64: 32, 32>}, {pipeline_mode = #tpu.pipeline_mode<synchronous>, transform_indices = @transform_2, window_bounds = array<i64: 32, 1>}, {pipeline_mode = #tpu.pipeline_mode<synchronous>, transform_indices = @transform_3, window_bounds = array<i64: 32, 32>}, {pipeline_mode = #tpu.pipeline_mode<synchronous>, transform_indices = @transform_4, window_bounds = array<i64: 32, 1>}, {pipeline_mode = #tpu.pipeline_mode<synchronous>, transform_indices = @transform_5, window_bounds = array<i64: 16, 32>}, {pipeline_mode = #tpu.pipeline_mode<synchronous>, transform_indices = @transform_6, window_bounds = array<i64: 16, 1>}, {transform_indices = @transform_7, window_bounds = array<i64: 128, 16>}]} {
    %c0 = arith.constant 0 : index
    %c0_0 = arith.constant 0 : index
    %0 = vector.load %arg1[%c0, %c0_0] : memref<128x32xf32, #tpu.memory_space<vmem>>, vector<128x32xf32>
    %1 = tpu.transpose %0, [1, 0] : vector<128x32xf32> -> vector<32x128xf32>
    %2 = arith.truncf %1 : vector<32x128xf32> to vector<32x128xbf16>
    %c0_1 = arith.constant 0 : index
    %c0_2 = arith.constant 0 : index
    %3 = vector.load %arg2[%c0_1, %c0_2] : memref<32x32xbf16, #tpu.memory_space<vmem>>, vector<32x32xbf16>
    %cst = arith.constant dense<0.000000e+00> : vector<32x128xf32>
    %4 = tpu.matmul %3, %2, %cst {dimension_numbers = #tpu.dot_dimension_numbers<[1], [0], [0], [1], [0, 0, 1, 1], [], []>} : vector<32x32xbf16>, vector<32x128xbf16>, vector<32x128xf32> -> vector<32x128xf32>
    %c0_3 = arith.constant 0 : index
    %c0_4 = arith.constant 0 : index
    %5 = vector.load %arg3[%c0_3, %c0_4] : memref<32x1xf32, #tpu.memory_space<vmem>>, vector<32x1xf32>
    %6 = vector.broadcast %5 : vector<32x1xf32> to vector<32x128xf32>
    %7 = arith.addf %4, %6 : vector<32x128xf32>
    %cst_5 = arith.constant 0.000000e+00 : f32
    %8 = vector.broadcast %cst_5 : f32 to vector<32x128xf32>
    %9 = arith.maximumf %7, %8 : vector<32x128xf32>
    %c0_6 = arith.constant 0 : index
    %c0_7 = arith.constant 0 : index
    %10 = vector.load %arg4[%c0_6, %c0_7] : memref<32x32xbf16, #tpu.memory_space<vmem>>, vector<32x32xbf16>
    %11 = arith.truncf %9 : vector<32x128xf32> to vector<32x128xbf16>
    %cst_8 = arith.constant dense<0.000000e+00> : vector<32x128xf32>
    %12 = tpu.matmul %10, %11, %cst_8 {dimension_numbers = #tpu.dot_dimension_numbers<[1], [0], [0], [1], [0, 0, 1, 1], [], []>} : vector<32x32xbf16>, vector<32x128xbf16>, vector<32x128xf32> -> vector<32x128xf32>
    %c0_9 = arith.constant 0 : index
    %c0_10 = arith.constant 0 : index
    %13 = vector.load %arg5[%c0_9, %c0_10] : memref<32x1xf32, #tpu.memory_space<vmem>>, vector<32x1xf32>
    %14 = vector.broadcast %13 : vector<32x1xf32> to vector<32x128xf32>
    %15 = arith.addf %12, %14 : vector<32x128xf32>
    %cst_11 = arith.constant 0.000000e+00 : f32
    %16 = vector.broadcast %cst_11 : f32 to vector<32x128xf32>
    %17 = arith.maximumf %15, %16 : vector<32x128xf32>
    %c0_12 = arith.constant 0 : index
    %c0_13 = arith.constant 0 : index
    %18 = vector.load %arg6[%c0_12, %c0_13] : memref<16x32xbf16, #tpu.memory_space<vmem>>, vector<16x32xbf16>
    %19 = arith.truncf %17 : vector<32x128xf32> to vector<32x128xbf16>
    %cst_14 = arith.constant dense<0.000000e+00> : vector<16x128xf32>
    %20 = tpu.matmul %18, %19, %cst_14 {dimension_numbers = #tpu.dot_dimension_numbers<[1], [0], [0], [1], [0, 0, 1, 1], [], []>} : vector<16x32xbf16>, vector<32x128xbf16>, vector<16x128xf32> -> vector<16x128xf32>
    %c0_15 = arith.constant 0 : index
    %c0_16 = arith.constant 0 : index
    %21 = vector.load %arg7[%c0_15, %c0_16] : memref<16x1xf32, #tpu.memory_space<vmem>>, vector<16x1xf32>
    %22 = vector.broadcast %21 : vector<16x1xf32> to vector<16x128xf32>
    %23 = arith.addf %20, %22 : vector<16x128xf32>
    %24 = tpu.transpose %23, [1, 0] : vector<16x128xf32> -> vector<128x16xf32>
    %c0_17 = arith.constant 0 : index
    %c0_18 = arith.constant 0 : index
    %25 = vector.load %arg8[%c0_17, %c0_18] : memref<128x16xf32, #tpu.memory_space<vmem>>, vector<128x16xf32>
    tpu.vector_store %arg8[%c0_17, %c0_18], %24 {strides = array<i32>} : memref<128x16xf32, #tpu.memory_space<vmem>>, vector<128x16xf32>,
    return
  }
  func.func @transform_0(%arg0: i32) -> (i32, i32) {
    %c0_i32 = arith.constant 0 : i32
    %c0_i32_0 = arith.constant 0 : i32
    return %arg0, %c0_i32 : i32, i32
  }
  func.func @transform_1(%arg0: i32) -> (i32, i32) {
    %c0_i32 = arith.constant 0 : i32
    %c0_i32_0 = arith.constant 0 : i32
    %c0_i32_1 = arith.constant 0 : i32
    return %c0_i32, %c0_i32_0 : i32, i32
  }
  func.func @transform_2(%arg0: i32) -> (i32, i32) {
    %c0_i32 = arith.constant 0 : i32
    %c0_i32_0 = arith.constant 0 : i32
    %c0_i32_1 = arith.constant 0 : i32
    return %c0_i32, %c0_i32_0 : i32, i32
  }
  func.func @transform_3(%arg0: i32) -> (i32, i32) {
    %c0_i32 = arith.constant 0 : i32
    %c0_i32_0 = arith.constant 0 : i32
    %c0_i32_1 = arith.constant 0 : i32
    return %c0_i32, %c0_i32_0 : i32, i32
  }
  func.func @transform_4(%arg0: i32) -> (i32, i32) {
    %c0_i32 = arith.constant 0 : i32
    %c0_i32_0 = arith.constant 0 : i32
    %c0_i32_1 = arith.constant 0 : i32
    return %c0_i32, %c0_i32_0 : i32, i32
  }
  func.func @transform_5(%arg0: i32) -> (i32, i32) {
    %c0_i32 = arith.constant 0 : i32
    %c0_i32_0 = arith.constant 0 : i32
    %c0_i32_1 = arith.constant 0 : i32
    return %c0_i32, %c0_i32_0 : i32, i32
  }
  func.func @transform_6(%arg0: i32) -> (i32, i32) {
    %c0_i32 = arith.constant 0 : i32
    %c0_i32_0 = arith.constant 0 : i32
    %c0_i32_1 = arith.constant 0 : i32
    return %c0_i32, %c0_i32_0 : i32, i32
  }
  func.func @transform_7(%arg0: i32) -> (i32, i32) {
    %c0_i32 = arith.constant 0 : i32
    %c0_i32_0 = arith.constant 0 : i32
    return %arg0, %c0_i32 : i32, i32
  }
}

</mosaic_0001>

<llo_original>
// kernel: tpu_custom_call.1
$region0: #{tpu_custom_call.1}
  #allocation0 [shape = 'u32[]', space=smem, size = 0x4, offset = 0x4, fixed_abs, tag = 'smem constant byte address 0x4 - core index']
  #allocation1 [shape = 'u32[144,128]{1,0:T(1,128)}', space=vmem, size = 0x12000, scoped, tag = 'internal scratch']
  %s0 = inlined_call_operand.vmem [shape: f32[8,32], index: 0, kind: input, shape index: {}]
  %s1 = inlined_call_operand.vmem [shape: bf16[32,32], index: 1, kind: input, shape index: {}]
  %s2 = inlined_call_operand.vmem [shape: f32[32,1], index: 2, kind: input, shape index: {}]
  %s3 = inlined_call_operand.vmem [shape: bf16[32,32], index: 3, kind: input, shape index: {}]
  %s4 = inlined_call_operand.vmem [shape: f32[32,1], index: 4, kind: input, shape index: {}]
  %s5 = inlined_call_operand.vmem [shape: bf16[16,32], index: 5, kind: input, shape index: {}]
  %s6 = inlined_call_operand.vmem [shape: f32[16,1], index: 6, kind: input, shape index: {}]
  %s7 = inlined_call_operand.hbm [shape: f32[8,16], index: 7, kind: output, shape index: {}]
  %s8 = sld [smem:[#allocation0]]
  $region38: #{tpu_custom_call.1} parent=0
    _
  %s10 = ssub.s32 1, %s8
  %s11 = scalar_select 0, %s10, %s8
  $region1: #{tpu_custom_call.1} parent=0
    #allocation2 [shape = 'u8[65536]{0}', space=vmem, size = 0x10000, scoped, tag = 'output window, operand 0, single buffered']
    #allocation3 [shape = 's32[1]{0}', space=sflag, size = 0x4, scoped, tag = 'scoped memory for tpu_custom_call.1']
    %12 = vsyncpa [#allocation3], 0
    // Predicated region
    $region2: #{tpu_custom_call.1} parent=1 // pred_check
      _
    $region3: #{tpu_custom_call.1} parent=1 // pred_check_branch
      %14 = sbr.rel (0) target = $region5
    $region4: #{tpu_custom_call.1} parent=1 // pred_region
      _
    $region5: #{tpu_custom_call.1} parent=1 // pred_fallthru
      _
    // Predicated region
    $region6: #{tpu_custom_call.1} parent=1 // pred_check
      _
    $region7: #{tpu_custom_call.1} parent=1 // pred_check_branch
      %16 = sbr.rel (0) target = $region9
    $region8: #{tpu_custom_call.1} parent=1 // pred_region
      _
    $region9: #{tpu_custom_call.1} parent=1 // pred_fallthru
      _
    // Predicated region
    $region10: #{tpu_custom_call.1} parent=1 // pred_check
      _
    $region11: #{tpu_custom_call.1} parent=1 // pred_check_branch
      %18 = sbr.rel (0) target = $region13
    $region12: #{tpu_custom_call.1} parent=1 // pred_region
      _
    $region13: #{tpu_custom_call.1} parent=1 // pred_fallthru
      _
    // Predicated region
    $region14: #{tpu_custom_call.1} parent=1 // pred_check
      _
    $region15: #{tpu_custom_call.1} parent=1 // pred_check_branch
      %20 = sbr.rel (0) target = $region17
    $region16: #{tpu_custom_call.1} parent=1 // pred_region
      _
    $region17: #{tpu_custom_call.1} parent=1 // pred_fallthru
      _
    // Predicated region
    $region18: #{tpu_custom_call.1} parent=1 // pred_check
      _
    $region19: #{tpu_custom_call.1} parent=1 // pred_check_branch
      %22 = sbr.rel (0) target = $region21
    $region20: #{tpu_custom_call.1} parent=1 // pred_region
      _
    $region21: #{tpu_custom_call.1} parent=1 // pred_fallthru
      _
    // Predicated region
    $region22: #{tpu_custom_call.1} parent=1 // pred_check
      _
    $region23: #{tpu_custom_call.1} parent=1 // pred_check_branch
      %24 = sbr.rel (0) target = $region25
    $region24: #{tpu_custom_call.1} parent=1 // pred_region
      _
    $region25: #{tpu_custom_call.1} parent=1 // pred_fallthru
      _
    // Predicated region
    $region26: #{tpu_custom_call.1} parent=1 // pred_check
      _
    $region27: #{tpu_custom_call.1} parent=1 // pred_check_branch
      %26 = sbr.rel (0) target = $region29
    $region28: #{tpu_custom_call.1} parent=1 // pred_region
      _
    $region29: #{tpu_custom_call.1} parent=1 // pred_fallthru
      _
    %v28 = vld [vmem:[%s0] sm:$0xff]
    %v29 = vld [vmem:[%s0 + $0x8] sm:$0xff]
    %v30 = vld [vmem:[%s0 + $0x10] sm:$0xff]
    %v31 = vld [vmem:[%s0 + $0x18] sm:$0xff]
    %v32 = vld [vmem:[%s0 + $0x20] sm:$0xff]
    %v33 = vld [vmem:[%s0 + $0x28] sm:$0xff]
    %v34 = vld [vmem:[%s0 + $0x30] sm:$0xff]
    %v35 = vld [vmem:[%s0 + $0x38] sm:$0xff]
    %v36 = vld [vmem:[%s0 + $0x40] sm:$0xff]
    %v37 = vld [vmem:[%s0 + $0x48] sm:$0xff]
    %v38 = vld [vmem:[%s0 + $0x50] sm:$0xff]
    %v39 = vld [vmem:[%s0 + $0x58] sm:$0xff]
    %v40 = vld [vmem:[%s0 + $0x60] sm:$0xff]
    %v41 = vld [vmem:[%s0 + $0x68] sm:$0xff]
    %v42 = vld [vmem:[%s0 + $0x70] sm:$0xff]
    %v43 = vld [vmem:[%s0 + $0x78] sm:$0xff]
    %44 = vxpose.xlu0.b32.start [1/16] %v28, 128
    %45 = vxpose.xlu0.b32.cont [2/16] %v29, 128
    %46 = vxpose.xlu0.b32.cont [3/16] %v30, 128
    %47 = vxpose.xlu0.b32.cont [4/16] %v31, 128
    %48 = vxpose.xlu0.b32.cont [5/16] %v32, 128
    %49 = vxpose.xlu0.b32.cont [6/16] %v33, 128
    %50 = vxpose.xlu0.b32.cont [7/16] %v34, 128
    %51 = vxpose.xlu0.b32.cont [8/16] %v35, 128
    %52 = vxpose.xlu0.b32.cont [9/16] %v36, 128
    %53 = vxpose.xlu0.b32.cont [10/16] %v37, 128
    %54 = vxpose.xlu0.b32.cont [11/16] %v38, 128
    %55 = vxpose.xlu0.b32.cont [12/16] %v39, 128
    %56 = vxpose.xlu0.b32.cont [13/16] %v40, 128
    %57 = vxpose.xlu0.b32.cont [14/16] %v41, 128
    %58 = vxpose.xlu0.b32.cont [15/16] %v42, 128
    %59 = vxpose.xlu0.b32.end [16/16] %v43, 128
    %v60 = vpop.trf.xlu0
    %v61 = vpop.trf.xlu0
    %v62 = vpop.trf.xlu0
    %v63 = vpop.trf.xlu0
    %v64 = vpop.trf.xlu0
    %v65 = vpop.trf.xlu0
    %v66 = vpop.trf.xlu0
    %v67 = vpop.trf.xlu0
    %v68 = vpop.trf.xlu0
    %v69 = vpop.trf.xlu0
    %v70 = vpop.trf.xlu0
    %v71 = vpop.trf.xlu0
    %v72 = vpop.trf.xlu0
    %v73 = vpop.trf.xlu0
    %v74 = vpop.trf.xlu0
    %v75 = vpop.trf.xlu0
    %v76 = vpack.c.bf16 %v61, %v60
    %v77 = vpack.c.bf16 %v63, %v62
    %v78 = vld [vmem:[%s1] sm:$0xf]
    %v79 = vld [vmem:[%s1 + $0x4] sm:$0xf]
    %v80 = vld [vmem:[%s1 + $0x8] sm:$0xf]
    %v81 = vld [vmem:[%s1 + $0xc] sm:$0xf]
    %v82 = vld [vmem:[%s2] sm:$0xff]
    %v83 = vld [vmem:[%s2 + $0x8] sm:$0xff]
    %v84 = vld [vmem:[%s2 + $0x10] sm:$0xff]
    %v85 = vld [vmem:[%s2 + $0x18] sm:$0xff]
    %87 = vset.pattern.permute.xlu0 0
    %88 = vperm.xlu0 %87, %v82
    %v89 = vpop.permute.xlu0 %88
    %92 = vset.pattern.permute.xlu0 0
    %93 = vperm.xlu0 %92, %v83
    %v94 = vpop.permute.xlu0 %93
    %97 = vset.pattern.permute.xlu0 0
    %98 = vperm.xlu0 %97, %v84
    %v99 = vpop.permute.xlu0 %98
    %102 = vset.pattern.permute.xlu0 0
    %103 = vperm.xlu0 %102, %v85
    %v104 = vpop.permute.xlu0 %103
    %v110 = vunpack.c.l.b16 %v78
    %v111 = vunpack.c.l.b16 %v79
    %v112 = vunpack.c.l.b16 %v80
    %v113 = vunpack.c.l.b16 %v81
    %v114 = vpack.c.b16 %v111, %v110
    %v115 = vpack.c.b16 %v113, %v112
    %vm116 = vcmask 261120
    %v118 = vsel %vm116, %v114, 0
    %v121 = vsel %vm116, %v115, 0
    %123 = vmatprep.subr.bf16.mxu0 0
    %124 = vmatpush1.bf16.msra.mxu0 %v76
    %125 = vmatprep.subr.bf16.mxu0 0
    %126 = vmatpush1.bf16.msra.mxu0 %v77
    %127 = vmatprep.subr.bf16.mxu0 0
    %128 = vmatpush1.bf16.msra.mxu0 0
    %129 = vmatprep.subr.bf16.mxu0 0
    %130 = vmatpush1.bf16.msra.mxu0 0
    %131 = vmatprep.subr.bf16.mxu0 0
    %132 = vmatpush1.bf16.msra.mxu0 0
    %133 = vmatprep.subr.bf16.mxu0 0
    %134 = vmatpush1.bf16.msra.mxu0 0
    %135 = vmatprep.subr.bf16.mxu0 0
    %136 = vmatpush1.bf16.msra.mxu0 0
    %137 = vmatprep.subr.bf16.mxu0 0
    %138 = vmatpush1.bf16.msra.mxu0 0
    %139 = vmatprep.subr.bf16.mxu0 0
    %140 = vmatpush1.bf16.msra.mxu0 0
    %141 = vmatprep.subr.bf16.mxu0 0
    %142 = vmatpush1.bf16.msra.mxu0 0
    %143 = vmatprep.subr.bf16.mxu0 0
    %144 = vmatpush1.bf16.msra.mxu0 0
    %145 = vmatprep.subr.bf16.mxu0 0
    %146 = vmatpush1.bf16.msra.mxu0 0
    %147 = vmatprep.subr.bf16.mxu0 0
    %148 = vmatpush1.bf16.msra.mxu0 0
    %149 = vmatprep.subr.bf16.mxu0 0
    %150 = vmatpush1.bf16.msra.mxu0 0
    %151 = vmatprep.subr.bf16.mxu0 0
    %152 = vmatpush1.bf16.msra.mxu0 0
    %153 = vmatprep.subr.bf16.mxu0 0
    %154 = vmatpush1.bf16.msra.mxu0 0
    %155 = vmatprep.mubr.bf16.mxu0 0
    %156 = vmatmul.mubr.bf16.gmra.mrb[0].mxu0 %v118
    %v157 = vpop.f32.mrb[0].mxu0
    %v158 = vadd.f32 %v89, %v157
    %v159 = vpop.f32.mrb[0].mxu0
    %v160 = vpop.f32.mrb[0].mxu0
    %v161 = vadd.f32 %v94, %v160
    %v162 = vpop.f32.mrb[0].mxu0
    %163 = vmatprep.mubr.bf16.mxu0 0
    %164 = vmatmul.mubr.bf16.gmra.mrb[0].mxu0 %v121
    %v165 = vpop.f32.mrb[0].mxu0
    %v166 = vadd.f32 %v99, %v165
    %v167 = vpop.f32.mrb[0].mxu0
    %v168 = vpop.f32.mrb[0].mxu0
    %v169 = vadd.f32 %v104, %v168
    %v170 = vpop.f32.mrb[0].mxu0
    %171 = vdwg.mxu0
    %v172 = vmax.f32 %v158, 0.0
    %v173 = vmax.f32 %v161, 0.0
    %v174 = vmax.f32 %v166, 0.0
    %v175 = vmax.f32 %v169, 0.0
    %v176 = vld [vmem:[%s3] sm:$0xf]
    %v177 = vld [vmem:[%s3 + $0x4] sm:$0xf]
    %v178 = vld [vmem:[%s3 + $0x8] sm:$0xf]
    %v179 = vld [vmem:[%s3 + $0xc] sm:$0xf]
    %v180 = vpack.c.bf16 %v173, %v172
    %v181 = vpack.c.bf16 %v175, %v174
    %v182 = vld [vmem:[%s4] sm:$0xff]
    %v183 = vld [vmem:[%s4 + $0x8] sm:$0xff]
    %v184 = vld [vmem:[%s4 + $0x10] sm:$0xff]
    %v185 = vld [vmem:[%s4 + $0x18] sm:$0xff]
    %187 = vset.pattern.permute.xlu0 0
    %188 = vperm.xlu0 %187, %v182
    %v189 = vpop.permute.xlu0 %188
    %192 = vset.pattern.permute.xlu0 0
    %193 = vperm.xlu0 %192, %v183
    %v194 = vpop.permute.xlu0 %193
    %197 = vset.pattern.permute.xlu0 0
    %198 = vperm.xlu0 %197, %v184
    %v199 = vpop.permute.xlu0 %198
    %202 = vset.pattern.permute.xlu0 0
    %203 = vperm.xlu0 %202, %v185
    %v204 = vpop.permute.xlu0 %203
    %v210 = vunpack.c.l.b16 %v176
    %v211 = vunpack.c.l.b16 %v177
    %v212 = vunpack.c.l.b16 %v178
    %v213 = vunpack.c.l.b16 %v179
    %v214 = vpack.c.b16 %v211, %v210
    %v215 = vpack.c.b16 %v213, %v212
    %v217 = vsel %vm116, %v214, 0
    %v220 = vsel %vm116, %v215, 0
    %222 = vmatprep.subr.bf16.mxu0 0
    %223 = vmatpush1.bf16.msra.mxu0 %v180
    %224 = vmatprep.subr.bf16.mxu0 0
    %225 = vmatpush1.bf16.msra.mxu0 %v181
    %226 = vmatprep.subr.bf16.mxu0 0
    %227 = vmatpush1.bf16.msra.mxu0 0
    %228 = vmatprep.subr.bf16.mxu0 0
    %229 = vmatpush1.bf16.msra.mxu0 0
    %230 = vmatprep.subr.bf16.mxu0 0
    %231 = vmatpush1.bf16.msra.mxu0 0
    %232 = vmatprep.subr.bf16.mxu0 0
    %233 = vmatpush1.bf16.msra.mxu0 0
    %234 = vmatprep.subr.bf16.mxu0 0
    %235 = vmatpush1.bf16.msra.mxu0 0
    %236 = vmatprep.subr.bf16.mxu0 0
    %237 = vmatpush1.bf16.msra.mxu0 0
    %238 = vmatprep.subr.bf16.mxu0 0
    %239 = vmatpush1.bf16.msra.mxu0 0
    %240 = vmatprep.subr.bf16.mxu0 0
    %241 = vmatpush1.bf16.msra.mxu0 0
    %242 = vmatprep.subr.bf16.mxu0 0
    %243 = vmatpush1.bf16.msra.mxu0 0
    %244 = vmatprep.subr.bf16.mxu0 0
    %245 = vmatpush1.bf16.msra.mxu0 0
    %246 = vmatprep.subr.bf16.mxu0 0
    %247 = vmatpush1.bf16.msra.mxu0 0
    %248 = vmatprep.subr.bf16.mxu0 0
    %249 = vmatpush1.bf16.msra.mxu0 0
    %250 = vmatprep.subr.bf16.mxu0 0
    %251 = vmatpush1.bf16.msra.mxu0 0
    %252 = vmatprep.subr.bf16.mxu0 0
    %253 = vmatpush1.bf16.msra.mxu0 0
    %254 = vmatprep.mubr.bf16.mxu0 0
    %255 = vmatmul.mubr.bf16.gmra.mrb[0].mxu0 %v217
    %v256 = vpop.f32.mrb[0].mxu0
    %v257 = vadd.f32 %v189, %v256
    %v258 = vpop.f32.mrb[0].mxu0
    %v259 = vpop.f32.mrb[0].mxu0
    %v260 = vadd.f32 %v194, %v259
    %v261 = vpop.f32.mrb[0].mxu0
    %262 = vmatprep.mubr.bf16.mxu0 0
    %263 = vmatmul.mubr.bf16.gmra.mrb[0].mxu0 %v220
    %v264 = vpop.f32.mrb[0].mxu0
    %v265 = vadd.f32 %v199, %v264
    %v266 = vpop.f32.mrb[0].mxu0
    %v267 = vpop.f32.mrb[0].mxu0
    %v268 = vadd.f32 %v204, %v267
    %v269 = vpop.f32.mrb[0].mxu0
    %270 = vdwg.mxu0
    %v271 = vmax.f32 %v257, 0.0
    %v272 = vmax.f32 %v260, 0.0
    %v273 = vmax.f32 %v265, 0.0
    %v274 = vmax.f32 %v268, 0.0
    %v275 = vld [vmem:[%s5] sm:$0xf]
    %v276 = vld [vmem:[%s5 + $0x4] sm:$0xf]
    %v277 = vpack.c.bf16 %v272, %v271
    %v278 = vpack.c.bf16 %v274, %v273
    %v279 = vld [vmem:[%s6] sm:$0xff]
    %v280 = vld [vmem:[%s6 + $0x8] sm:$0xff]
    %282 = vset.pattern.permute.xlu0 0
    %283 = vperm.xlu0 %282, %v279
    %v284 = vpop.permute.xlu0 %283
    %287 = vset.pattern.permute.xlu0 0
    %288 = vperm.xlu0 %287, %v280
    %v289 = vpop.permute.xlu0 %288
    %v293 = vunpack.c.l.b16 %v275
    %v294 = vunpack.c.l.b16 %v276
    %v295 = vpack.c.b16 %v294, %v293
    %v297 = vsel %vm116, %v295, 0
    %299 = vmatprep.subr.bf16.mxu0 0
    %300 = vmatpush1.bf16.msra.mxu0 %v277
    %301 = vmatprep.subr.bf16.mxu0 0
    %302 = vmatpush1.bf16.msra.mxu0 %v278
    %303 = vmatprep.subr.bf16.mxu0 0
    %304 = vmatpush1.bf16.msra.mxu0 0
    %305 = vmatprep.subr.bf16.mxu0 0
    %306 = vmatpush1.bf16.msra.mxu0 0
    %307 = vmatprep.subr.bf16.mxu0 0
    %308 = vmatpush1.bf16.msra.mxu0 0
    %309 = vmatprep.subr.bf16.mxu0 0
    %310 = vmatpush1.bf16.msra.mxu0 0
    %311 = vmatprep.subr.bf16.mxu0 0
    %312 = vmatpush1.bf16.msra.mxu0 0
    %313 = vmatprep.subr.bf16.mxu0 0
    %314 = vmatpush1.bf16.msra.mxu0 0
    %315 = vmatprep.subr.bf16.mxu0 0
    %316 = vmatpush1.bf16.msra.mxu0 0
    %317 = vmatprep.subr.bf16.mxu0 0
    %318 = vmatpush1.bf16.msra.mxu0 0
    %319 = vmatprep.subr.bf16.mxu0 0
    %320 = vmatpush1.bf16.msra.mxu0 0
    %321 = vmatprep.subr.bf16.mxu0 0
    %322 = vmatpush1.bf16.msra.mxu0 0
    %323 = vmatprep.subr.bf16.mxu0 0
    %324 = vmatpush1.bf16.msra.mxu0 0
    %325 = vmatprep.subr.bf16.mxu0 0
    %326 = vmatpush1.bf16.msra.mxu0 0
    %327 = vmatprep.subr.bf16.mxu0 0
    %328 = vmatpush1.bf16.msra.mxu0 0
    %329 = vmatprep.subr.bf16.mxu0 0
    %330 = vmatpush1.bf16.msra.mxu0 0
    %331 = vmatprep.mubr.bf16.mxu0 0
    %332 = vmatmul.mubr.bf16.gmra.mrb[0].mxu0 %v297
    %v333 = vpop.f32.mrb[0].mxu0
    %v334 = vadd.f32 %v284, %v333
    %v335 = vpop.f32.mrb[0].mxu0
    %v336 = vpop.f32.mrb[0].mxu0
    %v337 = vadd.f32 %v289, %v336
    %v338 = vpop.f32.mrb[0].mxu0
    %339 = vdwg.mxu0
    %340 = vxpose.xlu0.b32.start [1/16] %v334, 128
    %341 = vxpose.xlu0.b32.cont [2/16] %v337, 128
    %342 = vxpose.xlu0.b32.cont [3/16] 0.0, 128
    %343 = vxpose.xlu0.b32.cont [4/16] 0.0, 128
    %344 = vxpose.xlu0.b32.cont [5/16] 0.0, 128
    %345 = vxpose.xlu0.b32.cont [6/16] 0.0, 128
    %346 = vxpose.xlu0.b32.cont [7/16] 0.0, 128
    %347 = vxpose.xlu0.b32.cont [8/16] 0.0, 128
    %348 = vxpose.xlu0.b32.cont [9/16] 0.0, 128
    %349 = vxpose.xlu0.b32.cont [10/16] 0.0, 128
    %350 = vxpose.xlu0.b32.cont [11/16] 0.0, 128
    %351 = vxpose.xlu0.b32.cont [12/16] 0.0, 128
    %352 = vxpose.xlu0.b32.cont [13/16] 0.0, 128
    %353 = vxpose.xlu0.b32.cont [14/16] 0.0, 128
    %354 = vxpose.xlu0.b32.cont [15/16] 0.0, 128
    %355 = vxpose.xlu0.b32.end [16/16] 0.0, 128
    %v356 = vpop.trf.xlu0
    %v357 = vpop.trf.xlu0
    %v358 = vpop.trf.xlu0
    %v359 = vpop.trf.xlu0
    %v360 = vpop.trf.xlu0
    %v361 = vpop.trf.xlu0
    %v362 = vpop.trf.xlu0
    %v363 = vpop.trf.xlu0
    %v364 = vpop.trf.xlu0
    %v365 = vpop.trf.xlu0
    %v366 = vpop.trf.xlu0
    %v367 = vpop.trf.xlu0
    %v368 = vpop.trf.xlu0
    %v369 = vpop.trf.xlu0
    %v370 = vpop.trf.xlu0
    %v371 = vpop.trf.xlu0
    %vm372 = vcmask 130048
    %373 = vst.msk [vmem:[#allocation2] sm:$0xff] %vm372, %v356
    %374 = vst.msk [vmem:[#allocation2 + $0x8] sm:$0xff] %vm372, %v357
    %375 = vst.msk [vmem:[#allocation2 + $0x10] sm:$0xff] %vm372, %v358
    %376 = vst.msk [vmem:[#allocation2 + $0x18] sm:$0xff] %vm372, %v359
    %377 = vst.msk [vmem:[#allocation2 + $0x20] sm:$0xff] %vm372, %v360
    %378 = vst.msk [vmem:[#allocation2 + $0x28] sm:$0xff] %vm372, %v361
    %379 = vst.msk [vmem:[#allocation2 + $0x30] sm:$0xff] %vm372, %v362
    %380 = vst.msk [vmem:[#allocation2 + $0x38] sm:$0xff] %vm372, %v363
    %381 = vst.msk [vmem:[#allocation2 + $0x40] sm:$0xff] %vm372, %v364
    %382 = vst.msk [vmem:[#allocation2 + $0x48] sm:$0xff] %vm372, %v365
    %383 = vst.msk [vmem:[#allocation2 + $0x50] sm:$0xff] %vm372, %v366
    %384 = vst.msk [vmem:[#allocation2 + $0x58] sm:$0xff] %vm372, %v367
    %385 = vst.msk [vmem:[#allocation2 + $0x60] sm:$0xff] %vm372, %v368
    %386 = vst.msk [vmem:[#allocation2 + $0x68] sm:$0xff] %vm372, %v369
    %387 = vst.msk [vmem:[#allocation2 + $0x70] sm:$0xff] %vm372, %v370
    %388 = vst.msk [vmem:[#allocation2 + $0x78] sm:$0xff] %vm372, %v371
    // Predicated region
    $region30: #{tpu_custom_call.1} parent=1 // pred_check
      _
    $region31: #{tpu_custom_call.1} parent=1 // pred_check_branch
      %390 = sbr.rel (0) target = $region33
    $region32: #{tpu_custom_call.1} parent=1 // pred_region
      %s392 = ssub.s32 2048, 128
      %393 = vsyncadd [#allocation3], %s392
      %s394 = sshll.u32 [#allocation2], 4
      %s395 = int_to_ptr.vmem [resolvable:$true] %s394
      %400 = dma.vmem_to_hbm [thread:$0]  %s395, 128, %s7, [#allocation3], 128, 128, 8
    $region33: #{tpu_custom_call.1} parent=1 // pred_fallthru
      _
    // Predicated region
    $region34: #{tpu_custom_call.1} parent=1 // pred_check
      _
    $region35: #{tpu_custom_call.1} parent=1 // pred_check_branch
      %402 = sbr.rel (0) target = $region37
    $region36: #{tpu_custom_call.1} parent=1 // pred_region
      %403 = dma.done [#allocation3], 2048
    $region37: #{tpu_custom_call.1} parent=1 // pred_fallthru
      _
    %404 = vsyncpa [#allocation3], 1

</llo_original>
